<compile_context>
chip_gen: v7x
topology: tpu7x:2x2x1
jax: 0.10.0
libtpu: 0.0.40
codegen_flags: <defaults>
</compile_context>

<pallas_src>
import functools

import jax
import jax.numpy as jnp
from jax import lax
from jax.experimental import pallas as pl
from jax.experimental.pallas import tpu as pltpu


def _round_up(n, m):
    return (n + m - 1) // m * m


def _pad2(a, rows, cols):
    pr, pc = rows - a.shape[0], cols - a.shape[1]
    if pr == 0 and pc == 0:
        return a
    return jnp.pad(a, ((0, pr), (0, pc)))


def _ffn_kernel(params_ref, prev_ref, x_ref, kwt_ref, vwt_ref, out_ref,
                xk_ref, acc_ref, *, hidden_size, n_i_tiles):
    i = pl.program_id(0)          # sequence tile (parallel)
    j = pl.program_id(1)          # intermediate-dim tile (arbitrary, innermost)

    @pl.when(j == 0)
    def _():
        params = params_ref[...]                       # (3, Hp) f32, resident
        x_k = params[0:1, :]
        ln_w = params[1:2, :]
        ln_b = params[2:3, :]
        inv_h = 1.0 / hidden_size

        def layernorm(v):
            # One-pass E[x^2]-E[x]^2: padded lanes of v are zero so the 1/H
            # scale is exact; zero-padded ln_w/ln_b keep padded lanes at zero.
            m = jnp.sum(v, axis=-1, keepdims=True) * inv_h
            msq = jnp.sum(v * v, axis=-1, keepdims=True) * inv_h
            return (v - m) * lax.rsqrt(msq - m * m + 1e-5) * ln_w + ln_b

        x_raw = x_ref[...].astype(jnp.float32)         # (tT, Hp)
        xn = layernorm(x_raw)

        # Token shift: past[r] = xn[r-1]; row 0 comes from the boundary input
        # (raw x row i*tT-1, LayerNorm'd here) or, for the first tile, from
        # `state`, which is already in the LN'd domain.
        prev_raw = prev_ref[0].astype(jnp.float32)     # (1, Hp)
        prev_row = jnp.where(i == 0, prev_raw, layernorm(prev_raw))
        rolled = pltpu.roll(xn, shift=1, axis=0)       # XLU sublane rotate
        row0 = lax.broadcasted_iota(jnp.int32, (xn.shape[0], 1), 0) == 0
        past = jnp.where(row0, prev_row, rolled)       # (tT, Hp)

        xk = xn + (past - xn) * x_k
        xk_ref[...] = xk.astype(xk_ref.dtype)          # bf16 MXU operand
        acc_ref[...] = x_raw                           # residual init

    # key = relu(xk @ Wk^T)^2 on a (tT, tI) slice; accumulate its value-matmul
    # contribution.  Weights were pre-transposed -> canonical contraction.
    k = jnp.dot(xk_ref[...], kwt_ref[...], preferred_element_type=jnp.float32)
    k = jnp.maximum(k, 0.0)
    k = k * k
    acc_ref[...] += jnp.dot(k.astype(vwt_ref.dtype), vwt_ref[...],
                            preferred_element_type=jnp.float32)

    @pl.when(j == n_i_tiles - 1)
    def _():
        out_ref[...] = acc_ref[...].astype(out_ref.dtype)


def rwkv7_feed_forward(x, state, x_k, ln_w, ln_b, key_w, value_w,
                       *, block_t=512, block_i=None,
                       weight_dtype=jnp.bfloat16):
    """x: (1, T, H) (any float dtype), state: (1, H); key_w: (I, H),
    value_w: (H, I) in native PyTorch nn.Linear layout.
    Returns (out (1, T, H) in x.dtype, state_out (1, H) f32)."""
    B, T, H = x.shape
    assert B == 1
    I = key_w.shape[0]
    f32 = jnp.float32

    Hp = _round_up(H, 128)                    # lane-dense hidden dim
    Ip0 = _round_up(I, 128)                   # lane-dense intermediate dim
    tT = min(block_t, _round_up(T, 8))        # sequence tile (sublane aligned)

    # --- explicit VMEM budget (double-buffer aware) -> pick tI / tT ---
    try:
        cap = int(pltpu.get_tpu_info().vmem_capacity_bytes)
    except Exception:
        cap = 64 << 20                        # conservative (fits every gen)
    budget = (cap * 3) // 4

    xbytes = jnp.dtype(x.dtype).itemsize
    wbytes = jnp.dtype(weight_dtype).itemsize

    def vmem_needed(tt, ti):
        fixed = 2 * 3 * Hp * 4 + 2 * 1 * Hp * 4            # params + prev row
        act = 2 * tt * Hp * xbytes + 2 * tt * Hp * xbytes   # x in + out tiles
        wts = 2 * Hp * ti * wbytes + 2 * ti * Hp * wbytes   # weight slices
        scr = tt * Hp * wbytes + tt * Hp * 4                # xk + acc scratch
        tmp = 3 * tt * Hp * 4 + tt * ti * 4                 # xn/past/xk + k slice
        return fixed + act + wts + scr + tmp

    if block_i is not None:
        tI = max(128, min(_round_up(block_i, 128), Ip0))
    else:
        tI = Ip0
    while tI > 128 and vmem_needed(tT, tI) > budget:
        tI = max(128, _round_up(tI // 2, 128))
    while tT > 8 and vmem_needed(tT, tI) > budget:
        tT = max(8, _round_up(tT // 2, 8))

    Tp = _round_up(T, tT)
    n_t = Tp // tT
    Ip = _round_up(Ip0, tI)
    n_i = Ip // tI
    vmem_limit = min(budget, max(int(vmem_needed(tT, tI) * 1.25) + (1 << 20),
                                 32 << 20))

    # --- operands (HBM layouts) ---
    x2 = _pad2(x[0], Tp, Hp)                                       # (Tp, Hp)

    params = jnp.concatenate([
        _pad2(x_k.reshape(1, H).astype(f32), 1, Hp),
        _pad2(ln_w.reshape(1, H).astype(f32), 1, Hp),
        _pad2(ln_b.reshape(1, H).astype(f32), 1, Hp),
    ], axis=0)                                                     # (3, Hp)

    # Boundary rows feeding each tile's token shift: raw x row i*tT-1 for
    # i >= 1, and the (already LN'd) `state` row for tile 0.
    state_row = state.reshape(1, H).astype(f32)
    if n_t > 1:
        idx = jnp.arange(1, n_t) * tT - 1
        boundary = x[0, idx, :].astype(f32)                        # (n_t-1, H)
        prev = jnp.concatenate([state_row, boundary], axis=0)
    else:
        prev = state_row
    prev = _pad2(prev, n_t, Hp).reshape(n_t, 1, Hp)                # (n_t,1,Hp)

    # Pad + transpose ONCE so the kernel's contractions are canonical.
    kwT = _pad2(key_w, Ip, Hp).T.astype(weight_dtype)              # (Hp, Ip)
    vwT = _pad2(value_w, Hp, Ip).T.astype(weight_dtype)            # (Ip, Hp)

    kernel = functools.partial(_ffn_kernel, hidden_size=H, n_i_tiles=n_i)

    grid_spec = pltpu.PrefetchScalarGridSpec(
        num_scalar_prefetch=0,
        grid=(n_t, n_i),
        in_specs=[
            pl.BlockSpec((3, Hp), lambda i, j: (0, 0)),        # params
            pl.BlockSpec((1, 1, Hp), lambda i, j: (i, 0, 0)),  # boundary row
            pl.BlockSpec((tT, Hp), lambda i, j: (i, 0)),       # x tile
            pl.BlockSpec((Hp, tI), lambda i, j: (0, j)),       # key weight^T
            pl.BlockSpec((tI, Hp), lambda i, j: (j, 0)),       # value weight^T
        ],
        out_specs=pl.BlockSpec((tT, Hp), lambda i, j: (i, 0)),
        scratch_shapes=[pltpu.VMEM((tT, Hp), weight_dtype),    # xk (bf16)
                        pltpu.VMEM((tT, Hp), jnp.float32)],    # f32 accumulator
    )

    out_p = pl.pallas_call(
        kernel,
        out_shape=jax.ShapeDtypeStruct((Tp, Hp), x.dtype),
        grid_spec=grid_spec,
        compiler_params=pltpu.CompilerParams(
            dimension_semantics=("parallel", "arbitrary"),
            vmem_limit_bytes=vmem_limit),
    )(params, prev, x2, kwT, vwT)

    out = out_p[:T, :H][None, :, :]

    # state_out = LN(x[:, -1, :]) -- a single row; exact two-pass LN in the
    # wrapper (keeps the kernel's output set megacore-safe).
    last = x[0, T - 1, :].astype(f32)
    m = jnp.mean(last)
    v = jnp.mean(jnp.square(last - m))
    state_out = ((last - m) * lax.rsqrt(v + 1e-5) * ln_w.reshape(-1)
                 + ln_b.reshape(-1)).reshape(1, H)
    if T == 1:
        # PyTorch's seq_length == 1 branch returns state_out shaped (1, 1, H).
        state_out = state_out.reshape(1, 1, H)
    return out, state_out


def _reference(x, state, x_k, ln_w, ln_b, key_w, value_w, wdtype=jnp.float32):
    """Pure-JAX reference mirroring the PyTorch forward (seq_length > 1 path).
    `wdtype` optionally mirrors the kernel's bf16 weight/activation casts."""
    last_x = x
    mean = jnp.mean(x, axis=-1, keepdims=True)
    var = jnp.mean((x - mean) ** 2, axis=-1, keepdims=True)
    xn = (x - mean) / jnp.sqrt(var + 1e-5) * ln_w + ln_b
    past = jnp.concatenate([state[:, None, :], xn[:, :-1, :]], axis=1)
    sx = past - xn
    xk = xn + sx * x_k.reshape(1, 1, -1)
    key = jnp.maximum(
        jnp.einsum('bth,ih->bti', xk.astype(wdtype), key_w.astype(wdtype),
                   preferred_element_type=jnp.float32), 0.0) ** 2
    value = jnp.einsum('bti,hi->bth', key.astype(wdtype), value_w.astype(wdtype),
                       preferred_element_type=jnp.float32)
    return value + last_x, xn[:, -1, :]


if __name__ == "__main__":
    H = 32          # hidden_size
    I = 256         # intermediate_size
    T = 40          # seq_length
    B = 1           # module asserts batch_size == 1

    key = jax.random.PRNGKey(0)
    ks = jax.random.split(key, 7)
    x = jax.random.normal(ks[0], (B, T, H), dtype=jnp.float32)
    state = jax.random.normal(ks[1], (B, H), dtype=jnp.float32)
    x_k = jax.random.uniform(ks[2], (1, 1, H), dtype=jnp.float32)          # ffn.x_k
    key_w = jax.random.normal(ks[3], (I, H), dtype=jnp.float32) * 0.05     # ffn.key.weight
    value_w = jax.random.normal(ks[4], (H, I), dtype=jnp.float32) * 0.05   # ffn.value.weight
    ln_w = 1.0 + 0.1 * jax.random.normal(ks[5], (H,), dtype=jnp.float32)   # ln2.weight
    ln_b = 0.1 * jax.random.normal(ks[6], (H,), dtype=jnp.float32)         # ln2.bias

    ref_out_bf, _ = _reference(x, state, x_k, ln_w, ln_b, key_w, value_w, jnp.bfloat16)
    ref_out_f32, ref_state = _reference(x, state, x_k, ln_w, ln_b, key_w, value_w, jnp.float32)

    # Run 1: default tiling (single T tile, weights fully resident).
    fwd = jax.jit(rwkv7_feed_forward)
    out, state_out = fwd(x, state, x_k, ln_w, ln_b, key_w, value_w)
    out = jax.block_until_ready(out)
    state_out = jax.block_until_ready(state_out)

    assert out.shape == (B, T, H) and state_out.shape == (B, H)
    assert jnp.allclose(out, ref_out_bf, atol=2e-3, rtol=2e-3)
    assert jnp.allclose(out, ref_out_f32, atol=3e-2, rtol=3e-2)
    assert jnp.allclose(state_out, ref_state, atol=1e-4, rtol=1e-4)

    # Run 2: force multiple T tiles and multiple I tiles to exercise the
    # parallel-sequence token shift and the intermediate-dim accumulator.
    fwd2 = jax.jit(functools.partial(rwkv7_feed_forward, block_t=16, block_i=128))
    out2, state_out2 = fwd2(x, state, x_k, ln_w, ln_b, key_w, value_w)
    out2 = jax.block_until_ready(out2)
    state_out2 = jax.block_until_ready(state_out2)

    assert out2.shape == (B, T, H) and state_out2.shape == (B, H)
    assert jnp.allclose(out2, ref_out_bf, atol=2e-3, rtol=2e-3)
    assert jnp.allclose(out2, ref_out_f32, atol=3e-2, rtol=3e-2)
    assert jnp.allclose(state_out2, ref_state, atol=1e-4, rtol=1e-4)

    print("KERNEL_OK")
</pallas_src>

<mosaic_0001>
module attributes {stable_mosaic.version = 11 : i64} {
  func.func @_ffn_kernel(%arg0: i32, %arg1: i32, %arg2: memref<3x128xf32, #tpu.memory_space<vmem>>, %arg3: memref<1x1x128xf32, #tpu.memory_space<vmem>>, %arg4: memref<40x128xf32, #tpu.memory_space<vmem>>, %arg5: memref<128x256xbf16, #tpu.memory_space<vmem>>, %arg6: memref<256x128xbf16, #tpu.memory_space<vmem>>, %arg7: memref<40x128xf32, #tpu.memory_space<vmem>>, %arg8: memref<40x128xbf16, #tpu.memory_space<vmem>>, %arg9: memref<40x128xf32, #tpu.memory_space<vmem>>) attributes {dimension_semantics = [#tpu.dimension_semantics<parallel>, #tpu.dimension_semantics<arbitrary>], iteration_bounds = array<i64: 1, 1>, scalar_prefetch = 0 : i64, scratch_operands = 2 : i64, tpu.core_type = #tpu.core_type<tc>, window_params = [{pipeline_mode = #tpu.pipeline_mode<synchronous>, transform_indices = @transform_0, window_bounds = array<i64: 3, 128>}, {transform_indices = @transform_1, window_bounds = array<i64: 1, 1, 128>}, {transform_indices = @transform_2, window_bounds = array<i64: 40, 128>}, {transform_indices = @transform_3, window_bounds = array<i64: 128, 256>}, {transform_indices = @transform_4, window_bounds = array<i64: 256, 128>}, {transform_indices = @transform_5, window_bounds = array<i64: 40, 128>}]} {
    %c0_i32 = arith.constant 0 : i32
    %0 = arith.cmpi eq, %arg1, %c0_i32 : i32
    %1 = arith.extui %0 : i1 to i32
    %c0_i32_0 = arith.constant 0 : i32
    %2 = arith.cmpi ne, %1, %c0_i32_0 : i32
    scf.if %2 {
      %c0_14 = arith.constant 0 : index
      %c0_15 = arith.constant 0 : index
      %18 = vector.load %arg2[%c0_14, %c0_15] : memref<3x128xf32, #tpu.memory_space<vmem>>, vector<3x128xf32>
      %19 = vector.extract_strided_slice %18 {offsets = [0, 0], sizes = [1, 128], strides = [1, 1]} : vector<3x128xf32> to vector<1x128xf32>
      %20 = vector.extract_strided_slice %18 {offsets = [1, 0], sizes = [1, 128], strides = [1, 1]} : vector<3x128xf32> to vector<1x128xf32>
      %21 = vector.extract_strided_slice %18 {offsets = [2, 0], sizes = [1, 128], strides = [1, 1]} : vector<3x128xf32> to vector<1x128xf32>
      %c0_16 = arith.constant 0 : index
      %c0_17 = arith.constant 0 : index
      %22 = vector.load %arg4[%c0_16, %c0_17] : memref<40x128xf32, #tpu.memory_space<vmem>>, vector<40x128xf32>
      %cst_18 = arith.constant dense<0.000000e+00> : vector<40xf32>
      %23 = vector.multi_reduction <add>, %22, %cst_18 [1] : vector<40x128xf32> to vector<40xf32>
      %24 = vector.shape_cast %23 : vector<40xf32> to vector<40x1xf32>
      %cst_19 = arith.constant 3.125000e-02 : f32
      %25 = vector.broadcast %cst_19 : f32 to vector<40x1xf32>
      %26 = arith.mulf %24, %25 : vector<40x1xf32>
      %27 = arith.mulf %22, %22 : vector<40x128xf32>
      %cst_20 = arith.constant dense<0.000000e+00> : vector<40xf32>
      %28 = vector.multi_reduction <add>, %27, %cst_20 [1] : vector<40x128xf32> to vector<40xf32>
      %29 = vector.shape_cast %28 : vector<40xf32> to vector<40x1xf32>
      %cst_21 = arith.constant 3.125000e-02 : f32
      %30 = vector.broadcast %cst_21 : f32 to vector<40x1xf32>
      %31 = arith.mulf %29, %30 : vector<40x1xf32>
      %32 = vector.broadcast %26 : vector<40x1xf32> to vector<40x128xf32>
      %33 = arith.subf %22, %32 : vector<40x128xf32>
      %34 = arith.mulf %26, %26 : vector<40x1xf32>
      %35 = arith.subf %31, %34 : vector<40x1xf32>
      %cst_22 = arith.constant 9.99999974E-6 : f32
      %36 = vector.broadcast %cst_22 : f32 to vector<40x1xf32>
      %37 = arith.addf %35, %36 : vector<40x1xf32>
      %38 = math.rsqrt %37 : vector<40x1xf32>
      %39 = vector.broadcast %38 : vector<40x1xf32> to vector<40x128xf32>
      %40 = arith.mulf %33, %39 : vector<40x128xf32>
      %41 = vector.broadcast %20 : vector<1x128xf32> to vector<40x128xf32>
      %42 = arith.mulf %40, %41 : vector<40x128xf32>
      %43 = vector.broadcast %21 : vector<1x128xf32> to vector<40x128xf32>
      %44 = arith.addf %42, %43 : vector<40x128xf32>
      %c0_23 = arith.constant 0 : index
      %c0_24 = arith.constant 0 : index
      %c0_25 = arith.constant 0 : index
      %45 = vector.load %arg3[%c0_23, %c0_24, %c0_25] : memref<1x1x128xf32, #tpu.memory_space<vmem>>, vector<1x1x128xf32>
      %46 = vector.shape_cast %45 : vector<1x1x128xf32> to vector<1x128xf32>
      %c0_i32_26 = arith.constant 0 : i32
      %47 = arith.cmpi eq, %arg0, %c0_i32_26 : i32
      %cst_27 = arith.constant dense<0.000000e+00> : vector<1xf32>
      %48 = vector.multi_reduction <add>, %46, %cst_27 [1] : vector<1x128xf32> to vector<1xf32>
      %49 = vector.shape_cast %48 : vector<1xf32> to vector<1x1xf32>
      %cst_28 = arith.constant 3.125000e-02 : f32
      %50 = vector.broadcast %cst_28 : f32 to vector<1x1xf32>
      %51 = arith.mulf %49, %50 : vector<1x1xf32>
      %52 = arith.mulf %46, %46 : vector<1x128xf32>
      %cst_29 = arith.constant dense<0.000000e+00> : vector<1xf32>
      %53 = vector.multi_reduction <add>, %52, %cst_29 [1] : vector<1x128xf32> to vector<1xf32>
      %54 = vector.shape_cast %53 : vector<1xf32> to vector<1x1xf32>
      %cst_30 = arith.constant 3.125000e-02 : f32
      %55 = vector.broadcast %cst_30 : f32 to vector<1x1xf32>
      %56 = arith.mulf %54, %55 : vector<1x1xf32>
      %57 = vector.broadcast %51 : vector<1x1xf32> to vector<1x128xf32>
      %58 = arith.subf %46, %57 : vector<1x128xf32>
      %59 = arith.mulf %51, %51 : vector<1x1xf32>
      %60 = arith.subf %56, %59 : vector<1x1xf32>
      %cst_31 = arith.constant 9.99999974E-6 : f32
      %61 = vector.broadcast %cst_31 : f32 to vector<1x1xf32>
      %62 = arith.addf %60, %61 : vector<1x1xf32>
      %63 = math.rsqrt %62 : vector<1x1xf32>
      %64 = vector.broadcast %63 : vector<1x1xf32> to vector<1x128xf32>
      %65 = arith.mulf %58, %64 : vector<1x128xf32>
      %66 = arith.mulf %65, %20 : vector<1x128xf32>
      %67 = arith.addf %66, %21 : vector<1x128xf32>
      %68 = arith.select %47, %46, %67 : vector<1x128xf32>
      %c1_i32 = arith.constant 1 : i32
      %69 = tpu.dynamic_rotate %44 by %c1_i32 dim 0 : vector<40x128xf32>, i32 -> vector<40x128xf32>
      %70 = tpu.iota {dimensions = array<i32: 0>} : vector<40x1xi32>
      %c0_i32_32 = arith.constant 0 : i32
      %71 = vector.broadcast %c0_i32_32 : i32 to vector<40x1xi32>
      %72 = arith.cmpi eq, %70, %71 : vector<40x1xi32>
      %73 = vector.shape_cast %72 : vector<40x1xi1> to vector<40x1xi1>
      %74 = vector.broadcast %73 : vector<40x1xi1> to vector<40x128xi1>
      %75 = vector.shape_cast %68 : vector<1x128xf32> to vector<1x128xf32>
      %76 = vector.broadcast %75 : vector<1x128xf32> to vector<40x128xf32>
      %77 = arith.select %74, %76, %69 : vector<40x128xi1>, vector<40x128xf32>
      %78 = arith.subf %77, %44 : vector<40x128xf32>
      %79 = vector.broadcast %19 : vector<1x128xf32> to vector<40x128xf32>
      %80 = arith.mulf %78, %79 : vector<40x128xf32>
      %81 = arith.addf %44, %80 : vector<40x128xf32>
      %82 = arith.truncf %81 : vector<40x128xf32> to vector<40x128xbf16>
      %c0_33 = arith.constant 0 : index
      %c0_34 = arith.constant 0 : index
      %83 = vector.load %arg8[%c0_33, %c0_34] : memref<40x128xbf16, #tpu.memory_space<vmem>>, vector<40x128xbf16>
      tpu.vector_store %arg8[%c0_33, %c0_34], %82 {strides = array<i32>} : memref<40x128xbf16, #tpu.memory_space<vmem>>, vector<40x128xbf16>,
      %c0_35 = arith.constant 0 : index
      %c0_36 = arith.constant 0 : index
      %84 = vector.load %arg9[%c0_35, %c0_36] : memref<40x128xf32, #tpu.memory_space<vmem>>, vector<40x128xf32>
      tpu.vector_store %arg9[%c0_35, %c0_36], %22 {strides = array<i32>} : memref<40x128xf32, #tpu.memory_space<vmem>>, vector<40x128xf32>,
    } else {
    }
    %c0 = arith.constant 0 : index
    %c0_1 = arith.constant 0 : index
    %3 = vector.load %arg8[%c0, %c0_1] : memref<40x128xbf16, #tpu.memory_space<vmem>>, vector<40x128xbf16>
    %c0_2 = arith.constant 0 : index
    %c0_3 = arith.constant 0 : index
    %4 = vector.load %arg5[%c0_2, %c0_3] : memref<128x256xbf16, #tpu.memory_space<vmem>>, vector<128x256xbf16>
    %cst = arith.constant dense<0.000000e+00> : vector<40x256xf32>
    %5 = tpu.matmul %3, %4, %cst {dimension_numbers = #tpu.dot_dimension_numbers<[1], [0], [0], [1], [0, 0, 1, 1], [], []>} : vector<40x128xbf16>, vector<128x256xbf16>, vector<40x256xf32> -> vector<40x256xf32>
    %cst_4 = arith.constant 0.000000e+00 : f32
    %6 = vector.broadcast %cst_4 : f32 to vector<40x256xf32>
    %7 = arith.maximumf %5, %6 : vector<40x256xf32>
    %8 = arith.mulf %7, %7 : vector<40x256xf32>
    %c0_5 = arith.constant 0 : index
    %c0_6 = arith.constant 0 : index
    %9 = vector.load %arg9[%c0_5, %c0_6] : memref<40x128xf32, #tpu.memory_space<vmem>>, vector<40x128xf32>
    %10 = arith.truncf %8 : vector<40x256xf32> to vector<40x256xbf16>
    %c0_7 = arith.constant 0 : index
    %c0_8 = arith.constant 0 : index
    %11 = vector.load %arg6[%c0_7, %c0_8] : memref<256x128xbf16, #tpu.memory_space<vmem>>, vector<256x128xbf16>
    %cst_9 = arith.constant dense<0.000000e+00> : vector<40x128xf32>
    %12 = tpu.matmul %10, %11, %cst_9 {dimension_numbers = #tpu.dot_dimension_numbers<[1], [0], [0], [1], [0, 0, 1, 1], [], []>} : vector<40x256xbf16>, vector<256x128xbf16>, vector<40x128xf32> -> vector<40x128xf32>
    %13 = arith.addf %9, %12 : vector<40x128xf32>
    %c0_10 = arith.constant 0 : index
    %c0_11 = arith.constant 0 : index
    %14 = vector.load %arg9[%c0_10, %c0_11] : memref<40x128xf32, #tpu.memory_space<vmem>>, vector<40x128xf32>
    tpu.vector_store %arg9[%c0_10, %c0_11], %13 {strides = array<i32>} : memref<40x128xf32, #tpu.memory_space<vmem>>, vector<40x128xf32>,
    %c0_i32_12 = arith.constant 0 : i32
    %15 = arith.cmpi eq, %arg1, %c0_i32_12 : i32
    %16 = arith.extui %15 : i1 to i32
    %c0_i32_13 = arith.constant 0 : i32
    %17 = arith.cmpi ne, %16, %c0_i32_13 : i32
    scf.if %17 {
      %c0_14 = arith.constant 0 : index
      %c0_15 = arith.constant 0 : index
      %18 = vector.load %arg9[%c0_14, %c0_15] : memref<40x128xf32, #tpu.memory_space<vmem>>, vector<40x128xf32>
      %c0_16 = arith.constant 0 : index
      %c0_17 = arith.constant 0 : index
      %19 = vector.load %arg7[%c0_16, %c0_17] : memref<40x128xf32, #tpu.memory_space<vmem>>, vector<40x128xf32>
      tpu.vector_store %arg7[%c0_16, %c0_17], %18 {strides = array<i32>} : memref<40x128xf32, #tpu.memory_space<vmem>>, vector<40x128xf32>,
    } else {
    }
    return
  }
  func.func @transform_0(%arg0: i32, %arg1: i32) -> (i32, i32) {
    %c0_i32 = arith.constant 0 : i32
    %c0_i32_0 = arith.constant 0 : i32
    %c0_i32_1 = arith.constant 0 : i32
    return %c0_i32, %c0_i32_0 : i32, i32
  }
  func.func @transform_1(%arg0: i32, %arg1: i32) -> (i32, i32, i32) {
    %c0_i32 = arith.constant 0 : i32
    %c0_i32_0 = arith.constant 0 : i32
    %c0_i32_1 = arith.constant 0 : i32
    return %arg0, %c0_i32, %c0_i32_0 : i32, i32, i32
  }
  func.func @transform_2(%arg0: i32, %arg1: i32) -> (i32, i32) {
    %c0_i32 = arith.constant 0 : i32
    %c0_i32_0 = arith.constant 0 : i32
    return %arg0, %c0_i32 : i32, i32
  }
  func.func @transform_3(%arg0: i32, %arg1: i32) -> (i32, i32) {
    %c0_i32 = arith.constant 0 : i32
    %c0_i32_0 = arith.constant 0 : i32
    return %c0_i32, %arg1 : i32, i32
  }
  func.func @transform_4(%arg0: i32, %arg1: i32) -> (i32, i32) {
    %c0_i32 = arith.constant 0 : i32
    %c0_i32_0 = arith.constant 0 : i32
    return %arg1, %c0_i32 : i32, i32
  }
  func.func @transform_5(%arg0: i32, %arg1: i32) -> (i32, i32) {
    %c0_i32 = arith.constant 0 : i32
    %c0_i32_0 = arith.constant 0 : i32
    return %arg0, %c0_i32 : i32, i32
  }
}

</mosaic_0001>

<llo_original>
// kernel: rwkv7_feed_forward.1
$region0: #{rwkv7_feed_forward.1}
  #allocation0 [shape = 'u32[]', space=smem, size = 0x4, offset = 0x4, fixed_abs, tag = 'smem constant byte address 0x4 - core index']
  #allocation1 [shape = 'u32[144,128]{1,0:T(1,128)}', space=vmem, size = 0x12000, scoped, tag = 'internal scratch']
  #allocation2 [shape = 'bf16[40,128]{1,0:T(8,128)(2,1)}', space=vmem, size = 0x2800, scoped, tag = 'scratch operand']
  #allocation3 [shape = 'f32[40,128]{1,0:T(8,128)}', space=vmem, size = 0x5000, scoped, tag = 'scratch operand']
  %s0 = inlined_call_operand.vmem [shape: f32[3,128], index: 0, kind: input, shape index: {}]
  %s1 = inlined_call_operand.vmem [shape: f32[1,1,128], index: 1, kind: input, shape index: {}]
  %s2 = inlined_call_operand.vmem [shape: f32[40,128], index: 2, kind: input, shape index: {}]
  %s3 = inlined_call_operand.vmem [shape: bf16[128,256], index: 3, kind: input, shape index: {}]
  %s4 = inlined_call_operand.vmem [shape: bf16[256,128], index: 4, kind: input, shape index: {}]
  %s5 = inlined_call_operand.vmem [shape: f32[40,128], index: 5, kind: output, shape index: {}]
  %s6 = sld [smem:[#allocation0]]
  $region38: #{rwkv7_feed_forward.1} parent=0
    _
  %s8 = ssub.s32 1, %s6
  %s9 = scalar_select 0, %s8, %s6
  // Predicated region
  $region2: #{rwkv7_feed_forward.1} parent=0 // pred_check
    _
  $region3: #{rwkv7_feed_forward.1} parent=0 // pred_check_branch
    %11 = sbr.rel (0) target = $region5
  $region4: #{rwkv7_feed_forward.1} parent=0 // pred_region
    _
  $region5: #{rwkv7_feed_forward.1} parent=0 // pred_fallthru
    _
  // Predicated region
  $region6: #{rwkv7_feed_forward.1} parent=0 // pred_check
    _
  $region7: #{rwkv7_feed_forward.1} parent=0 // pred_check_branch
    %13 = sbr.rel (0) target = $region9
  $region8: #{rwkv7_feed_forward.1} parent=0 // pred_region
    _
  $region9: #{rwkv7_feed_forward.1} parent=0 // pred_fallthru
    _
  // Predicated region
  $region10: #{rwkv7_feed_forward.1} parent=0 // pred_check
    _
  $region11: #{rwkv7_feed_forward.1} parent=0 // pred_check_branch
    %15 = sbr.rel (0) target = $region13
  $region12: #{rwkv7_feed_forward.1} parent=0 // pred_region
    _
  $region13: #{rwkv7_feed_forward.1} parent=0 // pred_fallthru
    _
  // Predicated region
  $region14: #{rwkv7_feed_forward.1} parent=0 // pred_check
    _
  $region15: #{rwkv7_feed_forward.1} parent=0 // pred_check_branch
    %17 = sbr.rel (0) target = $region17
  $region16: #{rwkv7_feed_forward.1} parent=0 // pred_region
    _
  $region17: #{rwkv7_feed_forward.1} parent=0 // pred_fallthru
    _
  // Predicated region
  $region18: #{rwkv7_feed_forward.1} parent=0 // pred_check
    _
  $region19: #{rwkv7_feed_forward.1} parent=0 // pred_check_branch
    %19 = sbr.rel (0) target = $region21
  $region20: #{rwkv7_feed_forward.1} parent=0 // pred_region
    _
  $region21: #{rwkv7_feed_forward.1} parent=0 // pred_fallthru
    _
  %p21 = scmp.eq.s32.totalorder 0, 0
  // Predicated region
  $region22: #{rwkv7_feed_forward.1} parent=0 // pred_check
    %p22 = pneg %p21
  $region23: #{rwkv7_feed_forward.1} parent=0 // pred_check_branch
    %24 = sbr.rel (%p22) target = $region25
  $region24: #{rwkv7_feed_forward.1} parent=0 // pred_region
    %v25 = vld [vmem:[%s0] sm:$0x7]
    %v26 = vld [vmem:[%s2] sm:$0xff]
    %v27 = vld [vmem:[%s2 + $0x8] sm:$0xff]
    %v28 = vld [vmem:[%s2 + $0x10] sm:$0xff]
    %v29 = vld [vmem:[%s2 + $0x18] sm:$0xff]
    %v30 = vld [vmem:[%s2 + $0x20] sm:$0xff]
    %31 = vadd.xlane.f32.xlu0 %v26
    %v32 = vpop.xlane.xlu0 %31
    %33 = vadd.xlane.f32.xlu0 %v27
    %v34 = vpop.xlane.xlu0 %33
    %35 = vadd.xlane.f32.xlu0 %v28
    %v36 = vpop.xlane.xlu0 %35
    %37 = vadd.xlane.f32.xlu0 %v29
    %v38 = vpop.xlane.xlu0 %37
    %39 = vadd.xlane.f32.xlu0 %v30
    %v40 = vpop.xlane.xlu0 %39
    %v41 = vmul.f32 %v32, 0.03125
    %v42 = vmul.f32 %v34, 0.03125
    %v43 = vmul.f32 %v36, 0.03125
    %v44 = vmul.f32 %v38, 0.03125
    %v45 = vmul.f32 %v40, 0.03125
    %v46 = vmul.f32 %v26, %v26
    %v47 = vmul.f32 %v27, %v27
    %v48 = vmul.f32 %v28, %v28
    %v49 = vmul.f32 %v29, %v29
    %v50 = vmul.f32 %v30, %v30
    %51 = vadd.xlane.f32.xlu0 %v46
    %v52 = vpop.xlane.xlu0 %51
    %53 = vadd.xlane.f32.xlu0 %v47
    %v54 = vpop.xlane.xlu0 %53
    %55 = vadd.xlane.f32.xlu0 %v48
    %v56 = vpop.xlane.xlu0 %55
    %57 = vadd.xlane.f32.xlu0 %v49
    %v58 = vpop.xlane.xlu0 %57
    %59 = vadd.xlane.f32.xlu0 %v50
    %v60 = vpop.xlane.xlu0 %59
    %v61 = vmul.f32 %v52, 0.03125
    %v62 = vmul.f32 %v54, 0.03125
    %v63 = vmul.f32 %v56, 0.03125
    %v64 = vmul.f32 %v58, 0.03125
    %v65 = vmul.f32 %v60, 0.03125
    %v66 = vsub.f32 %v26, %v41
    %v67 = vsub.f32 %v27, %v42
    %v68 = vsub.f32 %v28, %v43
    %v69 = vsub.f32 %v29, %v44
    %v70 = vsub.f32 %v30, %v45
    %v71 = vmul.f32 %v41, %v41
    %v72 = vmul.f32 %v42, %v42
    %v73 = vmul.f32 %v43, %v43
    %v74 = vmul.f32 %v44, %v44
    %v75 = vmul.f32 %v45, %v45
    %v76 = vsub.f32 %v61, %v71
    %v77 = vsub.f32 %v62, %v72
    %v78 = vsub.f32 %v63, %v73
    %v79 = vsub.f32 %v64, %v74
    %v80 = vsub.f32 %v65, %v75
    %v81 = vadd.f32 %v76, 1e-05
    %v82 = vadd.f32 %v77, 1e-05
    %v83 = vadd.f32 %v78, 1e-05
    %v84 = vadd.f32 %v79, 1e-05
    %v85 = vadd.f32 %v80, 1e-05
    %v86 = vrsqrt.pop %v81
    %v87 = vrsqrt.pop %v82
    %v88 = vrsqrt.pop %v83
    %v89 = vrsqrt.pop %v84
    %v90 = vrsqrt.pop %v85
    %v91 = vmul.f32 %v66, %v86
    %v92 = vmul.f32 %v67, %v87
    %v93 = vmul.f32 %v68, %v88
    %v94 = vmul.f32 %v69, %v89
    %v95 = vmul.f32 %v70, %v90
    %v96 = vlaneseq
    %v97 = vshrl.u32 %v96, 7
    %v98 = vsub.s32 1, %v97
    %v99 = vrot.slane %v25, %v98
    %v100 = vmul.f32 %v91, %v99
    %v101 = vmul.f32 %v92, %v99
    %v102 = vmul.f32 %v93, %v99
    %v103 = vmul.f32 %v94, %v99
    %v104 = vmul.f32 %v95, %v99
    %v105 = vlaneseq
    %v106 = vshrl.u32 %v105, 7
    %v107 = vsub.s32 2, %v106
    %v108 = vrot.slane %v25, %v107
    %v109 = vadd.f32 %v100, %v108
    %v110 = vadd.f32 %v101, %v108
    %v111 = vadd.f32 %v102, %v108
    %v112 = vadd.f32 %v103, %v108
    %v113 = vadd.f32 %v104, %v108
    %v114 = vld [vmem:[%s1] sm:$0x1]
    %p115 = scmp.eq.s32.totalorder 0, 0
    %vm116 = vcmask 1040384
    %v117 = vsel %vm116, %v114, 0.0
    %118 = vadd.xlane.f32.xlu0 %v117
    %v119 = vpop.xlane.xlu0 %118
    %v120 = vmul.f32 %v119, 0.03125
    %v121 = vmul.f32 %v114, %v114
    %v122 = vsel %vm116, %v121, 0.0
    %123 = vadd.xlane.f32.xlu0 %v122
    %v124 = vpop.xlane.xlu0 %123
    %v125 = vmul.f32 %v124, 0.03125
    %v126 = vsub.f32 %v114, %v120
    %v127 = vmul.f32 %v120, %v120
    %v128 = vsub.f32 %v125, %v127
    %v129 = vadd.f32 %v128, 1e-05
    %v130 = vrsqrt.pop %v129
    %v131 = vmul.f32 %v126, %v130
    %v134 = vunpack.c.l.s4 1966171168
    %v135 = vunpack.c.0.s8 %v134
    %v136 = vlaneseq
    %v137 = vshrl.u32 %v136, 7
    %v138 = vsub.s32 %v135, %v137
    %v139 = vrot.slane %v25, %v138
    %v140 = vcombine.high %v139, %v139
    %v142 = vunpack.c.l.s4 1966171168
    %v143 = vunpack.c.0.s8 %v142
    %v144 = vlaneseq
    %v145 = vshrl.u32 %v144, 7
    %v146 = vsub.s32 %v143, %v145
    %v147 = vrot.slane %v139, %v146
    %v149 = vunpack.c.l.s4 1966171168
    %v150 = vunpack.c.0.s8 %v149
    %v151 = vlaneseq
    %v152 = vshrl.u32 %v151, 7
    %v153 = vsub.s32 %v150, %v152
    %v154 = vrot.slane %v140, %v153
    %v156 = vmul.f32 %v131, %v154
    %v157 = vcombine.high %v147, %v147
    %v159 = vadd.f32 %v156, %v157
    %s160 = scalar_select %p115, 1, 0
    %v161 = vstv %s160
    %vm162 = vcmp.eq.s32.totalorder %v161, 1
    %v163 = vsel %vm162, %v114, %v159
    %v164 = vrot.slane %v109, 7
    %v165 = vrot.slane %v110, 7
    %v166 = vrot.slane %v111, 7
    %v167 = vrot.slane %v112, 7
    %v168 = vrot.slane %v113, 7
    %v169 = vlaneseq
    %v170 = vshrl.u32 %v169, 7
    %vm171 = vcmp.lt.s32.totalorder %v170, 1
    %v172 = vsel %vm171, %v167, %v168
    %v173 = vsel %vm171, %v166, %v167
    %v174 = vsel %vm171, %v165, %v166
    %v175 = vsel %vm171, %v164, %v165
    %v176 = vsel %vm171, %v168, %v164
    %v177 = vadd.s32 %v170, 8
    %v178 = vadd.s32 %v170, 16
    %v179 = vadd.s32 %v170, 24
    %v180 = vadd.s32 %v170, 32
    %vm181 = vcmp.eq.s32.totalorder %v170, 0
    %vm182 = vcmp.eq.s32.totalorder %v177, 0
    %vm183 = vcmp.eq.s32.totalorder %v178, 0
    %vm184 = vcmp.eq.s32.totalorder %v179, 0
    %vm185 = vcmp.eq.s32.totalorder %v180, 0
    %v186 = vsel %vm181, 1, 0
    %v187 = vsel %vm182, 1, 0
    %v188 = vsel %vm183, 1, 0
    %v189 = vsel %vm184, 1, 0
    %v190 = vsel %vm185, 1, 0
    %vm191 = vcmp.eq.s32.totalorder %v186, 1
    %vm192 = vcmp.eq.s32.totalorder %v187, 1
    %vm193 = vcmp.eq.s32.totalorder %v188, 1
    %vm194 = vcmp.eq.s32.totalorder %v189, 1
    %vm195 = vcmp.eq.s32.totalorder %v190, 1
    %v197 = vlaneseq
    %v198 = vshrl.u32 %v197, 7
    %v199 = vsub.s32 0, %v198
    %v200 = vrot.slane %v163, %v199
    %v202 = vsel %vm191, %v200, %v176
    %v203 = vsel %vm192, %v200, %v175
    %v204 = vsel %vm193, %v200, %v174
    %v205 = vsel %vm194, %v200, %v173
    %v206 = vsel %vm195, %v200, %v172
    %v207 = vsub.f32 %v202, %v109
    %v208 = vsub.f32 %v203, %v110
    %v209 = vsub.f32 %v204, %v111
    %v210 = vsub.f32 %v205, %v112
    %v211 = vsub.f32 %v206, %v113
    %v212 = vlaneseq
    %v213 = vshrl.u32 %v212, 7
    %v214 = vsub.s32 0, %v213
    %v215 = vrot.slane %v25, %v214
    %v216 = vmul.f32 %v207, %v215
    %v217 = vmul.f32 %v208, %v215
    %v218 = vmul.f32 %v209, %v215
    %v219 = vmul.f32 %v210, %v215
    %v220 = vmul.f32 %v211, %v215
    %v221 = vadd.f32 %v109, %v216
    %v222 = vadd.f32 %v110, %v217
    %v223 = vadd.f32 %v111, %v218
    %v224 = vadd.f32 %v112, %v219
    %v225 = vadd.f32 %v113, %v220
    %v226 = vpack.c.bf16 %v222, %v221
    %v227 = vpack.c.bf16 %v224, %v223
    %v228 = vpack.c.bf16 %v225, %v225
    %v232 = vunpack.c.l.b16 %v226
    %v233 = vunpack.c.h.b16 %v226
    %v234 = vunpack.c.l.b16 %v227
    %v235 = vunpack.c.h.b16 %v227
    %v236 = vunpack.c.l.b16 %v228
    %v237 = vpack.c.b16 %v232, %v232
    %v238 = vpack.c.b16 %v233, %v233
    %v239 = vpack.c.b16 %v234, %v234
    %v240 = vpack.c.b16 %v235, %v235
    %v241 = vpack.c.b16 %v236, %v236
    %247 = vst [vmem:[#allocation2] sm:$0xf] %v237
    %248 = vst [vmem:[#allocation2 + $0x4] sm:$0xf] %v238
    %249 = vst [vmem:[#allocation2 + $0x8] sm:$0xf] %v239
    %250 = vst [vmem:[#allocation2 + $0xc] sm:$0xf] %v240
    %251 = vst [vmem:[#allocation2 + $0x10] sm:$0xf] %v241
    %252 = vst [vmem:[#allocation3] sm:$0xff] %v26
    %253 = vst [vmem:[#allocation3 + $0x8] sm:$0xff] %v27
    %254 = vst [vmem:[#allocation3 + $0x10] sm:$0xff] %v28
    %255 = vst [vmem:[#allocation3 + $0x18] sm:$0xff] %v29
    %256 = vst [vmem:[#allocation3 + $0x20] sm:$0xff] %v30
  $region25: #{rwkv7_feed_forward.1} parent=0 // pred_fallthru
    _
  %v257 = vld [vmem:[#allocation2] sm:$0xf]
  %v258 = vld [vmem:[#allocation2 + $0x4] sm:$0xf]
  %v259 = vld [vmem:[#allocation2 + $0x8] sm:$0xf]
  %v260 = vld [vmem:[#allocation2 + $0xc] sm:$0xf]
  %v261 = vld [vmem:[#allocation2 + $0x10] sm:$0xf]
  %v262 = vld [vmem:[%s3] sm:$0xff]
  %v263 = vld [vmem:[%s3 + $0x8] sm:$0xff]
  %v264 = vld [vmem:[%s3 + $0x10] sm:$0xff]
  %v265 = vld [vmem:[%s3 + $0x18] sm:$0xff]
  %v266 = vld [vmem:[%s3 + $0x20] sm:$0xff]
  %v267 = vld [vmem:[%s3 + $0x28] sm:$0xff]
  %v268 = vld [vmem:[%s3 + $0x30] sm:$0xff]
  %v269 = vld [vmem:[%s3 + $0x38] sm:$0xff]
  %v270 = vld [vmem:[%s3 + $0x40] sm:$0xff]
  %v271 = vld [vmem:[%s3 + $0x48] sm:$0xff]
  %v272 = vld [vmem:[%s3 + $0x50] sm:$0xff]
  %v273 = vld [vmem:[%s3 + $0x58] sm:$0xff]
  %v274 = vld [vmem:[%s3 + $0x60] sm:$0xff]
  %v275 = vld [vmem:[%s3 + $0x68] sm:$0xff]
  %v276 = vld [vmem:[%s3 + $0x70] sm:$0xff]
  %v277 = vld [vmem:[%s3 + $0x78] sm:$0xff]
  %v283 = vunpack.c.l.b16 %v257
  %v284 = vunpack.c.l.b16 %v258
  %v285 = vunpack.c.l.b16 %v259
  %v286 = vunpack.c.l.b16 %v260
  %v287 = vunpack.c.l.b16 %v261
  %v288 = vpack.c.b16 %v284, %v283
  %v289 = vpack.c.b16 %v286, %v285
  %v290 = vpack.c.b16 %v287, %v287
  %v310 = vunpack.c.l.b16 %v262
  %v311 = vunpack.c.h.b16 %v262
  %v312 = vunpack.c.l.b16 %v263
  %v313 = vunpack.c.h.b16 %v263
  %v314 = vunpack.c.l.b16 %v264
  %v315 = vunpack.c.h.b16 %v264
  %v316 = vunpack.c.l.b16 %v265
  %v317 = vunpack.c.h.b16 %v265
  %v318 = vunpack.c.l.b16 %v266
  %v319 = vunpack.c.h.b16 %v266
  %v320 = vunpack.c.l.b16 %v267
  %v321 = vunpack.c.h.b16 %v267
  %v322 = vunpack.c.l.b16 %v268
  %v323 = vunpack.c.h.b16 %v268
  %v324 = vunpack.c.l.b16 %v269
  %v325 = vunpack.c.h.b16 %v269
  %v326 = vunpack.c.l.b16 %v270
  %v327 = vunpack.c.h.b16 %v270
  %v328 = vunpack.c.l.b16 %v271
  %v329 = vunpack.c.h.b16 %v271
  %v330 = vunpack.c.l.b16 %v272
  %v331 = vunpack.c.h.b16 %v272
  %v332 = vunpack.c.l.b16 %v273
  %v333 = vunpack.c.h.b16 %v273
  %v334 = vunpack.c.l.b16 %v274
  %v335 = vunpack.c.h.b16 %v274
  %v336 = vunpack.c.l.b16 %v275
  %v337 = vunpack.c.h.b16 %v275
  %v338 = vunpack.c.l.b16 %v276
  %v339 = vunpack.c.h.b16 %v276
  %v340 = vunpack.c.l.b16 %v277
  %v341 = vunpack.c.h.b16 %v277
  %v342 = vpack.c.b16 %v312, %v310
  %v343 = vpack.c.b16 %v313, %v311
  %v344 = vpack.c.b16 %v316, %v314
  %v345 = vpack.c.b16 %v317, %v315
  %v346 = vpack.c.b16 %v320, %v318
  %v347 = vpack.c.b16 %v321, %v319
  %v348 = vpack.c.b16 %v324, %v322
  %v349 = vpack.c.b16 %v325, %v323
  %v350 = vpack.c.b16 %v328, %v326
  %v351 = vpack.c.b16 %v329, %v327
  %v352 = vpack.c.b16 %v332, %v330
  %v353 = vpack.c.b16 %v333, %v331
  %v354 = vpack.c.b16 %v336, %v334
  %v355 = vpack.c.b16 %v337, %v335
  %v356 = vpack.c.b16 %v340, %v338
  %v357 = vpack.c.b16 %v341, %v339
  %374 = vmatprep.subr.bf16.mxu0 %v343
  %375 = vmatpush1.bf16.msra.mxu0 %v342
  %376 = vmatprep.subr.bf16.mxu0 %v345
  %377 = vmatpush1.bf16.msra.mxu0 %v344
  %378 = vmatprep.subr.bf16.mxu0 %v347
  %379 = vmatpush1.bf16.msra.mxu0 %v346
  %380 = vmatprep.subr.bf16.mxu0 %v349
  %381 = vmatpush1.bf16.msra.mxu0 %v348
  %382 = vmatprep.subr.bf16.mxu0 %v351
  %383 = vmatpush1.bf16.msra.mxu0 %v350
  %384 = vmatprep.subr.bf16.mxu0 %v353
  %385 = vmatpush1.bf16.msra.mxu0 %v352
  %386 = vmatprep.subr.bf16.mxu0 %v355
  %387 = vmatpush1.bf16.msra.mxu0 %v354
  %388 = vmatprep.subr.bf16.mxu0 %v357
  %389 = vmatpush1.bf16.msra.mxu0 %v356
  %390 = vmatprep.subr.bf16.mxu0 0
  %391 = vmatpush1.bf16.msra.mxu0 0
  %392 = vmatprep.subr.bf16.mxu0 0
  %393 = vmatpush1.bf16.msra.mxu0 0
  %394 = vmatprep.subr.bf16.mxu0 0
  %395 = vmatpush1.bf16.msra.mxu0 0
  %396 = vmatprep.subr.bf16.mxu0 0
  %397 = vmatpush1.bf16.msra.mxu0 0
  %398 = vmatprep.subr.bf16.mxu0 0
  %399 = vmatpush1.bf16.msra.mxu0 0
  %400 = vmatprep.subr.bf16.mxu0 0
  %401 = vmatpush1.bf16.msra.mxu0 0
  %402 = vmatprep.subr.bf16.mxu0 0
  %403 = vmatpush1.bf16.msra.mxu0 0
  %404 = vmatprep.subr.bf16.mxu0 0
  %405 = vmatpush1.bf16.msra.mxu0 0
  %406 = vmatprep.mubr.bf16.mxu0 0
  %407 = vmatmul.mubr.bf16.gmra.mrb[0].mxu0 %v288
  %v408 = vpop.f32.mrb[0].mxu0
  %v409 = vadd.f32 0.0, %v408
  %v410 = vpop.f32.mrb[0].mxu0
  %v411 = vadd.f32 0.0, %v410
  %v412 = vpop.f32.mrb[0].mxu0
  %v413 = vadd.f32 0.0, %v412
  %v414 = vpop.f32.mrb[0].mxu0
  %v415 = vadd.f32 0.0, %v414
  %416 = vmatprep.mubr.bf16.mxu0 0
  %417 = vmatmul.mubr.bf16.gmra.mrb[0].mxu0 %v289
  %v418 = vpop.f32.mrb[0].mxu0
  %v419 = vadd.f32 0.0, %v418
  %v420 = vpop.f32.mrb[0].mxu0
  %v421 = vadd.f32 0.0, %v420
  %v422 = vpop.f32.mrb[0].mxu0
  %v423 = vadd.f32 0.0, %v422
  %v424 = vpop.f32.mrb[0].mxu0
  %v425 = vadd.f32 0.0, %v424
  %426 = vmatprep.mubr.bf16.mxu0 0
  %427 = vmatmul.mubr.bf16.gmra.mrb[0].mxu0 %v290
  %v428 = vpop.f32.mrb[0].mxu0
  %v429 = vadd.f32 0.0, %v428
  %v430 = vpop.f32.mrb[0].mxu0
  %v431 = vadd.f32 0.0, %v430
  %v432 = vpop.f32.mrb[0].mxu0
  %v433 = vpop.f32.mrb[0].mxu0
  %434 = vdwg.mxu0
  %v435 = vmax.f32 %v409, 0.0
  %v436 = vmax.f32 %v411, 0.0
  %v437 = vmax.f32 %v413, 0.0
  %v438 = vmax.f32 %v415, 0.0
  %v439 = vmax.f32 %v419, 0.0
  %v440 = vmax.f32 %v421, 0.0
  %v441 = vmax.f32 %v423, 0.0
  %v442 = vmax.f32 %v425, 0.0
  %v443 = vmax.f32 %v429, 0.0
  %v444 = vmax.f32 %v431, 0.0
  %v445 = vmul.f32 %v435, %v435
  %v446 = vmul.f32 %v436, %v436
  %v447 = vmul.f32 %v437, %v437
  %v448 = vmul.f32 %v438, %v438
  %v449 = vmul.f32 %v439, %v439
  %v450 = vmul.f32 %v440, %v440
  %v451 = vmul.f32 %v441, %v441
  %v452 = vmul.f32 %v442, %v442
  %v453 = vmul.f32 %v443, %v443
  %v454 = vmul.f32 %v444, %v444
  %v455 = vld [vmem:[#allocation3] sm:$0xff]
  %v456 = vld [vmem:[#allocation3 + $0x8] sm:$0xff]
  %v457 = vld [vmem:[#allocation3 + $0x10] sm:$0xff]
  %v458 = vld [vmem:[#allocation3 + $0x18] sm:$0xff]
  %v459 = vld [vmem:[#allocation3 + $0x20] sm:$0xff]
  %v460 = vpack.c.bf16 %v447, %v445
  %v461 = vpack.c.bf16 %v448, %v446
  %v462 = vpack.c.bf16 %v451, %v449
  %v463 = vpack.c.bf16 %v452, %v450
  %v464 = vpack.c.bf16 %v453, %v453
  %v465 = vpack.c.bf16 %v454, %v454
  %v466 = vld [vmem:[%s4] sm:$0xf]
  %v467 = vld [vmem:[%s4 + $0x4] sm:$0xf]
  %v468 = vld [vmem:[%s4 + $0x8] sm:$0xf]
  %v469 = vld [vmem:[%s4 + $0xc] sm:$0xf]
  %v470 = vld [vmem:[%s4 + $0x10] sm:$0xf]
  %v471 = vld [vmem:[%s4 + $0x14] sm:$0xf]
  %v472 = vld [vmem:[%s4 + $0x18] sm:$0xf]
  %v473 = vld [vmem:[%s4 + $0x1c] sm:$0xf]
  %v474 = vld [vmem:[%s4 + $0x20] sm:$0xf]
  %v475 = vld [vmem:[%s4 + $0x24] sm:$0xf]
  %v476 = vld [vmem:[%s4 + $0x28] sm:$0xf]
  %v477 = vld [vmem:[%s4 + $0x2c] sm:$0xf]
  %v478 = vld [vmem:[%s4 + $0x30] sm:$0xf]
  %v479 = vld [vmem:[%s4 + $0x34] sm:$0xf]
  %v480 = vld [vmem:[%s4 + $0x38] sm:$0xf]
  %v481 = vld [vmem:[%s4 + $0x3c] sm:$0xf]
  %v482 = vld [vmem:[%s4 + $0x40] sm:$0xf]
  %v483 = vld [vmem:[%s4 + $0x44] sm:$0xf]
  %v484 = vld [vmem:[%s4 + $0x48] sm:$0xf]
  %v485 = vld [vmem:[%s4 + $0x4c] sm:$0xf]
  %v486 = vld [vmem:[%s4 + $0x50] sm:$0xf]
  %v487 = vld [vmem:[%s4 + $0x54] sm:$0xf]
  %v488 = vld [vmem:[%s4 + $0x58] sm:$0xf]
  %v489 = vld [vmem:[%s4 + $0x5c] sm:$0xf]
  %v490 = vld [vmem:[%s4 + $0x60] sm:$0xf]
  %v491 = vld [vmem:[%s4 + $0x64] sm:$0xf]
  %v492 = vld [vmem:[%s4 + $0x68] sm:$0xf]
  %v493 = vld [vmem:[%s4 + $0x6c] sm:$0xf]
  %v494 = vld [vmem:[%s4 + $0x70] sm:$0xf]
  %v495 = vld [vmem:[%s4 + $0x74] sm:$0xf]
  %v496 = vld [vmem:[%s4 + $0x78] sm:$0xf]
  %v497 = vld [vmem:[%s4 + $0x7c] sm:$0xf]
  %v530 = vunpack.c.l.b16 %v466
  %v531 = vunpack.c.l.b16 %v467
  %v532 = vunpack.c.l.b16 %v468
  %v533 = vunpack.c.l.b16 %v469
  %v534 = vunpack.c.l.b16 %v470
  %v535 = vunpack.c.l.b16 %v471
  %v536 = vunpack.c.l.b16 %v472
  %v537 = vunpack.c.l.b16 %v473
  %v538 = vunpack.c.l.b16 %v474
  %v539 = vunpack.c.l.b16 %v475
  %v540 = vunpack.c.l.b16 %v476
  %v541 = vunpack.c.l.b16 %v477
  %v542 = vunpack.c.l.b16 %v478
  %v543 = vunpack.c.l.b16 %v479
  %v544 = vunpack.c.l.b16 %v480
  %v545 = vunpack.c.l.b16 %v481
  %v546 = vunpack.c.l.b16 %v482
  %v547 = vunpack.c.l.b16 %v483
  %v548 = vunpack.c.l.b16 %v484
  %v549 = vunpack.c.l.b16 %v485
  %v550 = vunpack.c.l.b16 %v486
  %v551 = vunpack.c.l.b16 %v487
  %v552 = vunpack.c.l.b16 %v488
  %v553 = vunpack.c.l.b16 %v489
  %v554 = vunpack.c.l.b16 %v490
  %v555 = vunpack.c.l.b16 %v491
  %v556 = vunpack.c.l.b16 %v492
  %v557 = vunpack.c.l.b16 %v493
  %v558 = vunpack.c.l.b16 %v494
  %v559 = vunpack.c.l.b16 %v495
  %v560 = vunpack.c.l.b16 %v496
  %v561 = vunpack.c.l.b16 %v497
  %v562 = vpack.c.b16 %v531, %v530
  %v563 = vpack.c.b16 %v533, %v532
  %v564 = vpack.c.b16 %v535, %v534
  %v565 = vpack.c.b16 %v537, %v536
  %v566 = vpack.c.b16 %v539, %v538
  %v567 = vpack.c.b16 %v541, %v540
  %v568 = vpack.c.b16 %v543, %v542
  %v569 = vpack.c.b16 %v545, %v544
  %v570 = vpack.c.b16 %v547, %v546
  %v571 = vpack.c.b16 %v549, %v548
  %v572 = vpack.c.b16 %v551, %v550
  %v573 = vpack.c.b16 %v553, %v552
  %v574 = vpack.c.b16 %v555, %v554
  %v575 = vpack.c.b16 %v557, %v556
  %v576 = vpack.c.b16 %v559, %v558
  %v577 = vpack.c.b16 %v561, %v560
  %594 = vmatprep.subr.bf16.mxu0 0
  %595 = vmatpush1.bf16.msra.mxu0 %v562
  %596 = vmatprep.subr.bf16.mxu0 0
  %597 = vmatpush1.bf16.msra.mxu0 %v563
  %598 = vmatprep.subr.bf16.mxu0 0
  %599 = vmatpush1.bf16.msra.mxu0 %v564
  %600 = vmatprep.subr.bf16.mxu0 0
  %601 = vmatpush1.bf16.msra.mxu0 %v565
  %602 = vmatprep.subr.bf16.mxu0 0
  %603 = vmatpush1.bf16.msra.mxu0 %v566
  %604 = vmatprep.subr.bf16.mxu0 0
  %605 = vmatpush1.bf16.msra.mxu0 %v567
  %606 = vmatprep.subr.bf16.mxu0 0
  %607 = vmatpush1.bf16.msra.mxu0 %v568
  %608 = vmatprep.subr.bf16.mxu0 0
  %609 = vmatpush1.bf16.msra.mxu0 %v569
  %610 = vmatprep.subr.bf16.mxu0 0
  %611 = vmatpush1.bf16.msra.mxu0 %v570
  %612 = vmatprep.subr.bf16.mxu0 0
  %613 = vmatpush1.bf16.msra.mxu0 %v571
  %614 = vmatprep.subr.bf16.mxu0 0
  %615 = vmatpush1.bf16.msra.mxu0 %v572
  %616 = vmatprep.subr.bf16.mxu0 0
  %617 = vmatpush1.bf16.msra.mxu0 %v573
  %618 = vmatprep.subr.bf16.mxu0 0
  %619 = vmatpush1.bf16.msra.mxu0 %v574
  %620 = vmatprep.subr.bf16.mxu0 0
  %621 = vmatpush1.bf16.msra.mxu0 %v575
  %622 = vmatprep.subr.bf16.mxu0 0
  %623 = vmatpush1.bf16.msra.mxu0 %v576
  %624 = vmatprep.subr.bf16.mxu0 0
  %625 = vmatpush1.bf16.msra.mxu0 %v577
  %626 = vmatprep.mubr.bf16.mxu0 %v461
  %627 = vmatmul.mubr.bf16.gmra.mrb[0].mxu0 %v460
  %v628 = vpop.f32.mrb[0].mxu0
  %v629 = vadd.f32 0.0, %v628
  %v630 = vpop.f32.mrb[0].mxu0
  %v631 = vpop.f32.mrb[0].mxu0
  %v632 = vadd.f32 0.0, %v631
  %v633 = vpop.f32.mrb[0].mxu0
  %634 = vmatprep.mubr.bf16.mxu0 %v463
  %635 = vmatmul.mubr.bf16.gmra.mrb[0].mxu0 %v462
  %v636 = vpop.f32.mrb[0].mxu0
  %v637 = vadd.f32 0.0, %v636
  %v638 = vpop.f32.mrb[0].mxu0
  %v639 = vpop.f32.mrb[0].mxu0
  %v640 = vadd.f32 0.0, %v639
  %v641 = vpop.f32.mrb[0].mxu0
  %642 = vmatprep.mubr.bf16.mxu0 %v465
  %643 = vmatmul.mubr.bf16.gmra.mrb[0].mxu0 %v464
  %v644 = vpop.f32.mrb[0].mxu0
  %v645 = vadd.f32 0.0, %v644
  %v646 = vpop.f32.mrb[0].mxu0
  %v647 = vpop.f32.mrb[0].mxu0
  %v648 = vpop.f32.mrb[0].mxu0
  %649 = vdwg.mxu0
  %v650 = vadd.f32 %v455, %v629
  %v651 = vadd.f32 %v456, %v632
  %v652 = vadd.f32 %v457, %v637
  %v653 = vadd.f32 %v458, %v640
  %v654 = vadd.f32 %v459, %v645
  %655 = vst [vmem:[#allocation3] sm:$0xff] %v650
  %656 = vst [vmem:[#allocation3 + $0x8] sm:$0xff] %v651
  %657 = vst [vmem:[#allocation3 + $0x10] sm:$0xff] %v652
  %658 = vst [vmem:[#allocation3 + $0x18] sm:$0xff] %v653
  %659 = vst [vmem:[#allocation3 + $0x20] sm:$0xff] %v654
  // Predicated region
  $region26: #{rwkv7_feed_forward.1} parent=0 // pred_check
    %p660 = pneg %p21
  $region27: #{rwkv7_feed_forward.1} parent=0 // pred_check_branch
    %662 = sbr.rel (%p660) target = $region29
  $region28: #{rwkv7_feed_forward.1} parent=0 // pred_region
    %v663 = vld [vmem:[#allocation3] sm:$0xff]
    %v664 = vld [vmem:[#allocation3 + $0x8] sm:$0xff]
    %v665 = vld [vmem:[#allocation3 + $0x10] sm:$0xff]
    %v666 = vld [vmem:[#allocation3 + $0x18] sm:$0xff]
    %v667 = vld [vmem:[#allocation3 + $0x20] sm:$0xff]
    %668 = vst [vmem:[%s5] sm:$0xff] %v663
    %669 = vst [vmem:[%s5 + $0x8] sm:$0xff] %v664
    %670 = vst [vmem:[%s5 + $0x10] sm:$0xff] %v665
    %671 = vst [vmem:[%s5 + $0x18] sm:$0xff] %v666
    %672 = vst [vmem:[%s5 + $0x20] sm:$0xff] %v667
  $region29: #{rwkv7_feed_forward.1} parent=0 // pred_fallthru
    _
  // Predicated region
  $region30: #{rwkv7_feed_forward.1} parent=0 // pred_check
    _
  $region31: #{rwkv7_feed_forward.1} parent=0 // pred_check_branch
    %674 = sbr.rel (0) target = $region33
  $region32: #{rwkv7_feed_forward.1} parent=0 // pred_region
    _
  $region33: #{rwkv7_feed_forward.1} parent=0 // pred_fallthru
    _
  // Predicated region
  $region34: #{rwkv7_feed_forward.1} parent=0 // pred_check
    _
  $region35: #{rwkv7_feed_forward.1} parent=0 // pred_check_branch
    %676 = sbr.rel (0) target = $region37
  $region36: #{rwkv7_feed_forward.1} parent=0 // pred_region
    _
  $region37: #{rwkv7_feed_forward.1} parent=0 // pred_fallthru
    _

</llo_original>
